<compile_context>
chip_gen: v6e
topology: v6e:2x2x1
jax: 0.10.0
libtpu: 0.0.40
codegen_flags: <defaults>
</compile_context>

<pallas_src>
import functools

import jax
import jax.numpy as jnp
from jax import lax
from jax.experimental import pallas as pl
from jax.experimental.pallas import tpu as pltpu

_LANE = 128


def _round_up(v, m):
    return ((v + m - 1) // m) * m


# ----------------------------- Pallas kernel --------------------------------
def _fused_net_kernel(*refs, num_layers, expand):
    """Fused forward: x_{l+1} = relu(A_hat @ x_l @ W_l + b_l) for all layers.

    refs layout (all whole-array VMEM residents, no pipelining):
      refs[0]              A_hat (Np, Np)              bf16
      refs[1]              X     (Np, F0p)             bf16
      refs[2 : 2+L]        W_l   (Fin_p_l, Fout_p_l)   bf16  (per layer)
      refs[2+L : 2+2L]     b_l   (1, Fout_p_l)         f32   (per layer)
      refs[2+2L]           out   (Np, Flast_p)         lane-dense output slab
    """
    a_ref, x_ref = refs[0], refs[1]
    w_refs = refs[2:2 + num_layers]
    b_refs = refs[2 + num_layers:2 + 2 * num_layers]
    o_ref = refs[2 + 2 * num_layers]

    a = a_ref[...]
    x = x_ref[...]
    for l in range(num_layers):
        w = w_refs[l][...]
        b = b_refs[l][...]
        if expand[l]:
            # Expanding layer: (A @ X) @ W keeps the N^2 matmul on min(F).
            tmp = jnp.dot(a, x, preferred_element_type=jnp.float32)
            agg = jnp.dot(tmp.astype(jnp.bfloat16), w,
                          preferred_element_type=jnp.float32)
        else:
            # Contracting layer: A @ (X @ W).
            tmp = jnp.dot(x, w, preferred_element_type=jnp.float32)
            agg = jnp.dot(a, tmp.astype(jnp.bfloat16),
                          preferred_element_type=jnp.float32)
        out = jnp.maximum(agg + b, 0.0)          # f32 bias add + ReLU epilogue
        if l == num_layers - 1:
            o_ref[...] = out.astype(o_ref.dtype)
        else:
            # Padded node rows hold relu(b_l); harmless because A_hat's padded
            # columns are zero and the result is sliced in the wrapper.
            x = out.astype(jnp.bfloat16)         # stays resident on-chip


def fused_gcn_net(a_hat_pad, x, weights, biases, layer_dims,
                  out_dtype=jnp.float32):
    """Run the whole encoder+decoder stack in one grid-less pallas_call."""
    n, f0 = x.shape
    n_pad = a_hat_pad.shape[0]
    num_layers = len(layer_dims)
    assert layer_dims[0][0] == f0

    # Per-layer 128-aligned feature widths. f_out of layer l == f_in of layer
    # l+1, so padded widths line up and the activation flows through unchanged.
    padded_dims = tuple((_round_up(fi, _LANE), _round_up(fo, _LANE))
                        for fi, fo in layer_dims)
    f0_pad = padded_dims[0][0]
    f_last_pad = padded_dims[-1][1]
    expand = tuple(fo >= fi for fi, fo in padded_dims)

    # Zero-pad + cast MXU operands once in the wrapper (per-layer widths).
    x_pad = jnp.pad(x, ((0, n_pad - n), (0, f0_pad - f0))).astype(jnp.bfloat16)
    w_pads = [jnp.pad(w, ((0, fi_p - w.shape[0]), (0, fo_p - w.shape[1])))
              .astype(jnp.bfloat16)
              for w, (fi_p, fo_p) in zip(weights, padded_dims)]
    b_pads = [jnp.pad(b, (0, fo_p - b.shape[0])).astype(jnp.float32)
              .reshape(1, fo_p)
              for b, (_, fo_p) in zip(biases, padded_dims)]

    # Scoped-VMEM limit sized from the actual resident footprint (everything
    # is single-buffered and VMEM-resident), with headroom for f32 temps.
    f_max_pad = max(max(fi, fo) for fi, fo in padded_dims)
    resident_bytes = (
        n_pad * n_pad * 2                                  # A_hat bf16
        + n_pad * f0_pad * 2                               # X bf16
        + sum(fi * fo * 2 for fi, fo in padded_dims)       # weights bf16
        + sum(8 * fo * 4 for _, fo in padded_dims)         # biases f32 (tiled)
        + n_pad * f_last_pad * jnp.dtype(out_dtype).itemsize
        + 3 * n_pad * f_max_pad * 4)                       # f32 intermediates
    vmem_limit = int(min(64 << 20, max(16 << 20, resident_bytes * 2)))

    kernel = functools.partial(_fused_net_kernel,
                               num_layers=num_layers, expand=expand)
    resident_spec = pl.BlockSpec(memory_space=pltpu.MemorySpace.VMEM)
    out_pad = pl.pallas_call(
        kernel,
        out_shape=jax.ShapeDtypeStruct((n_pad, f_last_pad), out_dtype),
        in_specs=[resident_spec] * (2 + 2 * num_layers),
        out_specs=resident_spec,
        compiler_params=pltpu.CompilerParams(vmem_limit_bytes=vmem_limit),
    )(a_hat_pad, x_pad, *w_pads, *b_pads)

    f_final = layer_dims[-1][1]
    return out_pad[:n, :f_final]


# ------------------------------ JAX glue -------------------------------------
def build_normalized_adjacency_padded(edge_index, num_nodes, num_nodes_padded):
    """GCN-normalized adjacency D^{-1/2}(A+I)D^{-1/2}, built directly into the
    padded (Np, Np) buffer and cast to bf16 in the same fused expression.

    edge_index: int32 (2, E), row 0 = source, row 1 = destination (message
    flows src -> dst, matching torch_geometric). Duplicate edges are summed;
    a self-loop of weight 1 is added only where missing (matching gcn_norm's
    add_remaining_self_loops). Padded rows/cols have zero degree and therefore
    normalize to exactly zero, so they never leak into real nodes.
    """
    src, dst = edge_index[0], edge_index[1]
    adj = jnp.zeros((num_nodes_padded, num_nodes_padded), jnp.float32)
    adj = adj.at[dst, src].add(1.0)
    idx = jnp.arange(num_nodes)
    diag = adj[idx, idx]
    adj = adj.at[idx, idx].set(jnp.where(diag > 0, diag, 1.0))
    deg = adj.sum(axis=1)
    dinv_sqrt = jnp.where(deg > 0, lax.rsqrt(jnp.maximum(deg, 1e-12)), 0.0)
    return (dinv_sqrt[:, None] * adj * dinv_sqrt[None, :]).astype(jnp.bfloat16)


def init_params(key, channels):
    """Deterministic parameter init for encoder + decoder GCNConv layers."""
    enc = list(zip(channels[:-1], channels[1:]))
    dec = list(zip(channels[-1::-1], channels[-2::-1]))
    layer_dims = tuple((int(a), int(b)) for a, b in enc + dec)
    weights, biases = [], []
    for f_in, f_out in layer_dims:
        key, kw = jax.random.split(key)
        scale = 1.0 / jnp.sqrt(jnp.float32(f_in))
        weights.append(
            jax.random.uniform(kw, (f_in, f_out), jnp.float32, -scale, scale))
        biases.append(jnp.zeros((f_out,), jnp.float32))
    return tuple(weights), tuple(biases), layer_dims


@functools.partial(jax.jit, static_argnums=(4,))
def net_forward(x, edge_index, weights, biases, layer_dims):
    """Full Net forward: encoder stages then decoder stages, fused on TPU."""
    n = x.shape[0]
    n_pad = _round_up(n, _LANE)
    # TODO(synk): if edge_index is static across forwards, hoist/cache a_hat
    #             outside the jitted forward to skip the O(N^2) rebuild.
    a_hat = build_normalized_adjacency_padded(edge_index, n, n_pad)
    return fused_gcn_net(a_hat, x, weights, biases, layer_dims)


# ------------------------------- driver --------------------------------------
if __name__ == "__main__":
    key = jax.random.PRNGKey(0)

    # Small shapes: 16 nodes, channels [16, 32, 8]
    channels = [16, 32, 8]
    num_nodes = 16

    # Deterministic ring graph (bidirectional edges).
    idx = jnp.arange(num_nodes, dtype=jnp.int32)
    src = jnp.concatenate([idx, (idx + 1) % num_nodes])
    dst = jnp.concatenate([(idx + 1) % num_nodes, idx])
    edge_index = jnp.stack([src, dst], axis=0)            # (2, 2N) int32

    key, kx, kp = jax.random.split(key, 3)
    x = jax.random.normal(kx, (num_nodes, channels[0]), jnp.float32)

    weights, biases, layer_dims = init_params(kp, channels)

    out = net_forward(x, edge_index, weights, biases, layer_dims)
    out = jax.block_until_ready(out)

    assert out.shape == (num_nodes, channels[0]), out.shape
    assert bool(jnp.all(jnp.isfinite(out)))
    print("KERNEL_OK")
</pallas_src>

<mosaic_0001>
module attributes {stable_mosaic.version = 11 : i64} {
  func.func private @main(%arg0: i32) attributes {dimension_semantics = [#tpu.dimension_semantics<core_parallel>], iteration_bounds = array<i64: 2>, tpu.core_type = #tpu.core_type<sc_scalar_subcore>, window_params = []} {
    return
  }
}

module attributes {stable_mosaic.version = 11 : i64} {
  func.func private @main(%arg0: i32) attributes {dimension_semantics = [#tpu.dimension_semantics<core_parallel>], iteration_bounds = array<i64: 2>, tpu.core_type = #tpu.core_type<sc_scalar_subcore>, window_params = []} {
    return
  }
}

module attributes {stable_mosaic.version = 11 : i64} {
  func.func @_fused_net_kernel(%arg0: memref<128x128xbf16, #tpu.memory_space<vmem>>, %arg1: memref<128x128xbf16, #tpu.memory_space<vmem>>, %arg2: memref<128x128xbf16, #tpu.memory_space<vmem>>, %arg3: memref<128x128xbf16, #tpu.memory_space<vmem>>, %arg4: memref<128x128xbf16, #tpu.memory_space<vmem>>, %arg5: memref<128x128xbf16, #tpu.memory_space<vmem>>, %arg6: memref<1x128xf32, #tpu.memory_space<vmem>>, %arg7: memref<1x128xf32, #tpu.memory_space<vmem>>, %arg8: memref<1x128xf32, #tpu.memory_space<vmem>>, %arg9: memref<1x128xf32, #tpu.memory_space<vmem>>, %arg10: memref<128x128xf32, #tpu.memory_space<vmem>>) attributes {dimension_semantics = [], scalar_prefetch = 0 : i64, scratch_operands = 0 : i64, tpu.core_type = #tpu.core_type<tc>} {
    %c0 = arith.constant 0 : index
    %c0_0 = arith.constant 0 : index
    %0 = vector.load %arg0[%c0, %c0_0] : memref<128x128xbf16, #tpu.memory_space<vmem>>, vector<128x128xbf16>
    %c0_1 = arith.constant 0 : index
    %c0_2 = arith.constant 0 : index
    %1 = vector.load %arg1[%c0_1, %c0_2] : memref<128x128xbf16, #tpu.memory_space<vmem>>, vector<128x128xbf16>
    %c0_3 = arith.constant 0 : index
    %c0_4 = arith.constant 0 : index
    %2 = vector.load %arg2[%c0_3, %c0_4] : memref<128x128xbf16, #tpu.memory_space<vmem>>, vector<128x128xbf16>
    %c0_5 = arith.constant 0 : index
    %c0_6 = arith.constant 0 : index
    %3 = vector.load %arg6[%c0_5, %c0_6] : memref<1x128xf32, #tpu.memory_space<vmem>>, vector<1x128xf32>
    %cst = arith.constant dense<0.000000e+00> : vector<128x128xf32>
    %4 = tpu.matmul %0, %1, %cst {dimension_numbers = #tpu.dot_dimension_numbers<[1], [0], [0], [1], [0, 0, 1, 1], [], []>} : vector<128x128xbf16>, vector<128x128xbf16>, vector<128x128xf32> -> vector<128x128xf32>
    %5 = arith.truncf %4 : vector<128x128xf32> to vector<128x128xbf16>
    %cst_7 = arith.constant dense<0.000000e+00> : vector<128x128xf32>
    %6 = tpu.matmul %5, %2, %cst_7 {dimension_numbers = #tpu.dot_dimension_numbers<[1], [0], [0], [1], [0, 0, 1, 1], [], []>} : vector<128x128xbf16>, vector<128x128xbf16>, vector<128x128xf32> -> vector<128x128xf32>
    %7 = vector.broadcast %3 : vector<1x128xf32> to vector<128x128xf32>
    %8 = arith.addf %6, %7 : vector<128x128xf32>
    %cst_8 = arith.constant 0.000000e+00 : f32
    %9 = vector.broadcast %cst_8 : f32 to vector<128x128xf32>
    %10 = arith.maximumf %8, %9 : vector<128x128xf32>
    %11 = arith.truncf %10 : vector<128x128xf32> to vector<128x128xbf16>
    %c0_9 = arith.constant 0 : index
    %c0_10 = arith.constant 0 : index
    %12 = vector.load %arg3[%c0_9, %c0_10] : memref<128x128xbf16, #tpu.memory_space<vmem>>, vector<128x128xbf16>
    %c0_11 = arith.constant 0 : index
    %c0_12 = arith.constant 0 : index
    %13 = vector.load %arg7[%c0_11, %c0_12] : memref<1x128xf32, #tpu.memory_space<vmem>>, vector<1x128xf32>
    %cst_13 = arith.constant dense<0.000000e+00> : vector<128x128xf32>
    %14 = tpu.matmul %0, %11, %cst_13 {dimension_numbers = #tpu.dot_dimension_numbers<[1], [0], [0], [1], [0, 0, 1, 1], [], []>} : vector<128x128xbf16>, vector<128x128xbf16>, vector<128x128xf32> -> vector<128x128xf32>
    %15 = arith.truncf %14 : vector<128x128xf32> to vector<128x128xbf16>
    %cst_14 = arith.constant dense<0.000000e+00> : vector<128x128xf32>
    %16 = tpu.matmul %15, %12, %cst_14 {dimension_numbers = #tpu.dot_dimension_numbers<[1], [0], [0], [1], [0, 0, 1, 1], [], []>} : vector<128x128xbf16>, vector<128x128xbf16>, vector<128x128xf32> -> vector<128x128xf32>
    %17 = vector.broadcast %13 : vector<1x128xf32> to vector<128x128xf32>
    %18 = arith.addf %16, %17 : vector<128x128xf32>
    %cst_15 = arith.constant 0.000000e+00 : f32
    %19 = vector.broadcast %cst_15 : f32 to vector<128x128xf32>
    %20 = arith.maximumf %18, %19 : vector<128x128xf32>
    %21 = arith.truncf %20 : vector<128x128xf32> to vector<128x128xbf16>
    %c0_16 = arith.constant 0 : index
    %c0_17 = arith.constant 0 : index
    %22 = vector.load %arg4[%c0_16, %c0_17] : memref<128x128xbf16, #tpu.memory_space<vmem>>, vector<128x128xbf16>
    %c0_18 = arith.constant 0 : index
    %c0_19 = arith.constant 0 : index
    %23 = vector.load %arg8[%c0_18, %c0_19] : memref<1x128xf32, #tpu.memory_space<vmem>>, vector<1x128xf32>
    %cst_20 = arith.constant dense<0.000000e+00> : vector<128x128xf32>
    %24 = tpu.matmul %0, %21, %cst_20 {dimension_numbers = #tpu.dot_dimension_numbers<[1], [0], [0], [1], [0, 0, 1, 1], [], []>} : vector<128x128xbf16>, vector<128x128xbf16>, vector<128x128xf32> -> vector<128x128xf32>
    %25 = arith.truncf %24 : vector<128x128xf32> to vector<128x128xbf16>
    %cst_21 = arith.constant dense<0.000000e+00> : vector<128x128xf32>
    %26 = tpu.matmul %25, %22, %cst_21 {dimension_numbers = #tpu.dot_dimension_numbers<[1], [0], [0], [1], [0, 0, 1, 1], [], []>} : vector<128x128xbf16>, vector<128x128xbf16>, vector<128x128xf32> -> vector<128x128xf32>
    %27 = vector.broadcast %23 : vector<1x128xf32> to vector<128x128xf32>
    %28 = arith.addf %26, %27 : vector<128x128xf32>
    %cst_22 = arith.constant 0.000000e+00 : f32
    %29 = vector.broadcast %cst_22 : f32 to vector<128x128xf32>
    %30 = arith.maximumf %28, %29 : vector<128x128xf32>
    %31 = arith.truncf %30 : vector<128x128xf32> to vector<128x128xbf16>
    %c0_23 = arith.constant 0 : index
    %c0_24 = arith.constant 0 : index
    %32 = vector.load %arg5[%c0_23, %c0_24] : memref<128x128xbf16, #tpu.memory_space<vmem>>, vector<128x128xbf16>
    %c0_25 = arith.constant 0 : index
    %c0_26 = arith.constant 0 : index
    %33 = vector.load %arg9[%c0_25, %c0_26] : memref<1x128xf32, #tpu.memory_space<vmem>>, vector<1x128xf32>
    %cst_27 = arith.constant dense<0.000000e+00> : vector<128x128xf32>
    %34 = tpu.matmul %0, %31, %cst_27 {dimension_numbers = #tpu.dot_dimension_numbers<[1], [0], [0], [1], [0, 0, 1, 1], [], []>} : vector<128x128xbf16>, vector<128x128xbf16>, vector<128x128xf32> -> vector<128x128xf32>
    %35 = arith.truncf %34 : vector<128x128xf32> to vector<128x128xbf16>
    %cst_28 = arith.constant dense<0.000000e+00> : vector<128x128xf32>
    %36 = tpu.matmul %35, %32, %cst_28 {dimension_numbers = #tpu.dot_dimension_numbers<[1], [0], [0], [1], [0, 0, 1, 1], [], []>} : vector<128x128xbf16>, vector<128x128xbf16>, vector<128x128xf32> -> vector<128x128xf32>
    %37 = vector.broadcast %33 : vector<1x128xf32> to vector<128x128xf32>
    %38 = arith.addf %36, %37 : vector<128x128xf32>
    %cst_29 = arith.constant 0.000000e+00 : f32
    %39 = vector.broadcast %cst_29 : f32 to vector<128x128xf32>
    %40 = arith.maximumf %38, %39 : vector<128x128xf32>
    %c0_30 = arith.constant 0 : index
    %c0_31 = arith.constant 0 : index
    %41 = vector.load %arg10[%c0_30, %c0_31] : memref<128x128xf32, #tpu.memory_space<vmem>>, vector<128x128xf32>
    tpu.vector_store %arg10[%c0_30, %c0_31], %40 {strides = array<i32>} : memref<128x128xf32, #tpu.memory_space<vmem>>, vector<128x128xf32>,
    return
  }
}

</mosaic_0001>

<llo_original>
// kernel: net_forward.1
$region0: #{net_forward.1}
  #allocation0 [shape = 'u32[]', space=smem, size = 0x4, offset = 0x4, fixed_abs, tag = 'smem constant byte address 0x4 - core index']
  #allocation1 [shape = 'u32[144,128]{1,0:T(1,128)}', space=vmem, size = 0x12000, scoped, tag = 'internal scratch']
  %s0 = inlined_call_operand.vmem [shape: bf16[128,128], index: 0, kind: input, shape index: {}]
  %s1 = inlined_call_operand.vmem [shape: bf16[128,128], index: 1, kind: input, shape index: {}]
  %s2 = inlined_call_operand.vmem [shape: bf16[128,128], index: 2, kind: input, shape index: {}]
  %s3 = inlined_call_operand.vmem [shape: bf16[128,128], index: 3, kind: input, shape index: {}]
  %s4 = inlined_call_operand.vmem [shape: bf16[128,128], index: 4, kind: input, shape index: {}]
  %s5 = inlined_call_operand.vmem [shape: bf16[128,128], index: 5, kind: input, shape index: {}]
  %s6 = inlined_call_operand.vmem [shape: f32[1,128], index: 6, kind: input, shape index: {}]
  %s7 = inlined_call_operand.vmem [shape: f32[1,128], index: 7, kind: input, shape index: {}]
  %s8 = inlined_call_operand.vmem [shape: f32[1,128], index: 8, kind: input, shape index: {}]
  %s9 = inlined_call_operand.vmem [shape: f32[1,128], index: 9, kind: input, shape index: {}]
  %s10 = inlined_call_operand.vmem [shape: f32[128,128], index: 10, kind: output, shape index: {}]
  %s11 = sld [smem:[#allocation0]]
  $region50: #{net_forward.1} parent=0
    _
  %s13 = ssub.s32 1, %s11
  %s14 = scalar_select 0, %s13, %s11
  // Predicated region
  $region2: #{net_forward.1} parent=0 // pred_check
    _
  $region3: #{net_forward.1} parent=0 // pred_check_branch
    %16 = sbr.rel (0) target = $region5
  $region4: #{net_forward.1} parent=0 // pred_region
    _
  $region5: #{net_forward.1} parent=0 // pred_fallthru
    _
  // Predicated region
  $region6: #{net_forward.1} parent=0 // pred_check
    _
  $region7: #{net_forward.1} parent=0 // pred_check_branch
    %18 = sbr.rel (0) target = $region9
  $region8: #{net_forward.1} parent=0 // pred_region
    _
  $region9: #{net_forward.1} parent=0 // pred_fallthru
    _
  // Predicated region
  $region10: #{net_forward.1} parent=0 // pred_check
    _
  $region11: #{net_forward.1} parent=0 // pred_check_branch
    %20 = sbr.rel (0) target = $region13
  $region12: #{net_forward.1} parent=0 // pred_region
    _
  $region13: #{net_forward.1} parent=0 // pred_fallthru
    _
  // Predicated region
  $region14: #{net_forward.1} parent=0 // pred_check
    _
  $region15: #{net_forward.1} parent=0 // pred_check_branch
    %22 = sbr.rel (0) target = $region17
  $region16: #{net_forward.1} parent=0 // pred_region
    _
  $region17: #{net_forward.1} parent=0 // pred_fallthru
    _
  // Predicated region
  $region18: #{net_forward.1} parent=0 // pred_check
    _
  $region19: #{net_forward.1} parent=0 // pred_check_branch
    %24 = sbr.rel (0) target = $region21
  $region20: #{net_forward.1} parent=0 // pred_region
    _
  $region21: #{net_forward.1} parent=0 // pred_fallthru
    _
  // Predicated region
  $region22: #{net_forward.1} parent=0 // pred_check
    _
  $region23: #{net_forward.1} parent=0 // pred_check_branch
    %26 = sbr.rel (0) target = $region25
  $region24: #{net_forward.1} parent=0 // pred_region
    _
  $region25: #{net_forward.1} parent=0 // pred_fallthru
    _
  // Predicated region
  $region26: #{net_forward.1} parent=0 // pred_check
    _
  $region27: #{net_forward.1} parent=0 // pred_check_branch
    %28 = sbr.rel (0) target = $region29
  $region28: #{net_forward.1} parent=0 // pred_region
    _
  $region29: #{net_forward.1} parent=0 // pred_fallthru
    _
  // Predicated region
  $region30: #{net_forward.1} parent=0 // pred_check
    _
  $region31: #{net_forward.1} parent=0 // pred_check_branch
    %30 = sbr.rel (0) target = $region33
  $region32: #{net_forward.1} parent=0 // pred_region
    _
  $region33: #{net_forward.1} parent=0 // pred_fallthru
    _
  // Predicated region
  $region34: #{net_forward.1} parent=0 // pred_check
    _
  $region35: #{net_forward.1} parent=0 // pred_check_branch
    %32 = sbr.rel (0) target = $region37
  $region36: #{net_forward.1} parent=0 // pred_region
    _
  $region37: #{net_forward.1} parent=0 // pred_fallthru
    _
  // Predicated region
  $region38: #{net_forward.1} parent=0 // pred_check
    _
  $region39: #{net_forward.1} parent=0 // pred_check_branch
    %34 = sbr.rel (0) target = $region41
  $region40: #{net_forward.1} parent=0 // pred_region
    _
  $region41: #{net_forward.1} parent=0 // pred_fallthru
    _
  %v36 = vld [vmem:[%s0] sm:$0xf]
  %v37 = vld [vmem:[%s0 + $0x4] sm:$0xf]
  %v38 = vld [vmem:[%s0 + $0x8] sm:$0xf]
  %v39 = vld [vmem:[%s0 + $0xc] sm:$0xf]
  %v40 = vld [vmem:[%s0 + $0x10] sm:$0xf]
  %v41 = vld [vmem:[%s0 + $0x14] sm:$0xf]
  %v42 = vld [vmem:[%s0 + $0x18] sm:$0xf]
  %v43 = vld [vmem:[%s0 + $0x1c] sm:$0xf]
  %v44 = vld [vmem:[%s0 + $0x20] sm:$0xf]
  %v45 = vld [vmem:[%s0 + $0x24] sm:$0xf]
  %v46 = vld [vmem:[%s0 + $0x28] sm:$0xf]
  %v47 = vld [vmem:[%s0 + $0x2c] sm:$0xf]
  %v48 = vld [vmem:[%s0 + $0x30] sm:$0xf]
  %v49 = vld [vmem:[%s0 + $0x34] sm:$0xf]
  %v50 = vld [vmem:[%s0 + $0x38] sm:$0xf]
  %v51 = vld [vmem:[%s0 + $0x3c] sm:$0xf]
  %v52 = vld [vmem:[%s1] sm:$0xf]
  %v53 = vld [vmem:[%s1 + $0x4] sm:$0xf]
  %v54 = vld [vmem:[%s1 + $0x8] sm:$0xf]
  %v55 = vld [vmem:[%s1 + $0xc] sm:$0xf]
  %v56 = vld [vmem:[%s1 + $0x10] sm:$0xf]
  %v57 = vld [vmem:[%s1 + $0x14] sm:$0xf]
  %v58 = vld [vmem:[%s1 + $0x18] sm:$0xf]
  %v59 = vld [vmem:[%s1 + $0x1c] sm:$0xf]
  %v60 = vld [vmem:[%s1 + $0x20] sm:$0xf]
  %v61 = vld [vmem:[%s1 + $0x24] sm:$0xf]
  %v62 = vld [vmem:[%s1 + $0x28] sm:$0xf]
  %v63 = vld [vmem:[%s1 + $0x2c] sm:$0xf]
  %v64 = vld [vmem:[%s1 + $0x30] sm:$0xf]
  %v65 = vld [vmem:[%s1 + $0x34] sm:$0xf]
  %v66 = vld [vmem:[%s1 + $0x38] sm:$0xf]
  %v67 = vld [vmem:[%s1 + $0x3c] sm:$0xf]
  %v68 = vld [vmem:[%s2] sm:$0xf]
  %v69 = vld [vmem:[%s2 + $0x4] sm:$0xf]
  %v70 = vld [vmem:[%s2 + $0x8] sm:$0xf]
  %v71 = vld [vmem:[%s2 + $0xc] sm:$0xf]
  %v72 = vld [vmem:[%s2 + $0x10] sm:$0xf]
  %v73 = vld [vmem:[%s2 + $0x14] sm:$0xf]
  %v74 = vld [vmem:[%s2 + $0x18] sm:$0xf]
  %v75 = vld [vmem:[%s2 + $0x1c] sm:$0xf]
  %v76 = vld [vmem:[%s2 + $0x20] sm:$0xf]
  %v77 = vld [vmem:[%s2 + $0x24] sm:$0xf]
  %v78 = vld [vmem:[%s2 + $0x28] sm:$0xf]
  %v79 = vld [vmem:[%s2 + $0x2c] sm:$0xf]
  %v80 = vld [vmem:[%s2 + $0x30] sm:$0xf]
  %v81 = vld [vmem:[%s2 + $0x34] sm:$0xf]
  %v82 = vld [vmem:[%s2 + $0x38] sm:$0xf]
  %v83 = vld [vmem:[%s2 + $0x3c] sm:$0xf]
  %v84 = vld [vmem:[%s6] sm:$0x1]
  %v101 = vunpack.c.l.b16 %v36
  %v102 = vunpack.c.l.b16 %v37
  %v103 = vunpack.c.l.b16 %v38
  %v104 = vunpack.c.l.b16 %v39
  %v105 = vunpack.c.l.b16 %v40
  %v106 = vunpack.c.l.b16 %v41
  %v107 = vunpack.c.l.b16 %v42
  %v108 = vunpack.c.l.b16 %v43
  %v109 = vunpack.c.l.b16 %v44
  %v110 = vunpack.c.l.b16 %v45
  %v111 = vunpack.c.l.b16 %v46
  %v112 = vunpack.c.l.b16 %v47
  %v113 = vunpack.c.l.b16 %v48
  %v114 = vunpack.c.l.b16 %v49
  %v115 = vunpack.c.l.b16 %v50
  %v116 = vunpack.c.l.b16 %v51
  %v117 = vpack.c.b16 %v102, %v101
  %v118 = vpack.c.b16 %v104, %v103
  %v119 = vpack.c.b16 %v106, %v105
  %v120 = vpack.c.b16 %v108, %v107
  %v121 = vpack.c.b16 %v110, %v109
  %v122 = vpack.c.b16 %v112, %v111
  %v123 = vpack.c.b16 %v114, %v113
  %v124 = vpack.c.b16 %v116, %v115
  %v149 = vunpack.c.l.b16 %v52
  %v150 = vunpack.c.l.b16 %v53
  %v151 = vunpack.c.l.b16 %v54
  %v152 = vunpack.c.l.b16 %v55
  %v153 = vunpack.c.l.b16 %v56
  %v154 = vunpack.c.l.b16 %v57
  %v155 = vunpack.c.l.b16 %v58
  %v156 = vunpack.c.l.b16 %v59
  %v157 = vunpack.c.l.b16 %v60
  %v158 = vunpack.c.l.b16 %v61
  %v159 = vunpack.c.l.b16 %v62
  %v160 = vunpack.c.l.b16 %v63
  %v161 = vunpack.c.l.b16 %v64
  %v162 = vunpack.c.l.b16 %v65
  %v163 = vunpack.c.l.b16 %v66
  %v164 = vunpack.c.l.b16 %v67
  %v165 = vpack.c.b16 %v150, %v149
  %v166 = vpack.c.b16 %v152, %v151
  %v167 = vpack.c.b16 %v154, %v153
  %v168 = vpack.c.b16 %v156, %v155
  %v169 = vpack.c.b16 %v158, %v157
  %v170 = vpack.c.b16 %v160, %v159
  %v171 = vpack.c.b16 %v162, %v161
  %v172 = vpack.c.b16 %v164, %v163
  %181 = vmatprep.subr.bf16.mxu0 0
  %182 = vmatpush1.bf16.msra.mxu0 %v172
  %183 = vmatprep.subr.bf16.mxu0 0
  %184 = vmatpush1.bf16.msra.mxu0 %v171
  %185 = vmatprep.subr.bf16.mxu0 0
  %186 = vmatpush1.bf16.msra.mxu0 %v170
  %187 = vmatprep.subr.bf16.mxu0 0
  %188 = vmatpush1.bf16.msra.mxu0 %v169
  %189 = vmatprep.subr.bf16.mxu0 0
  %190 = vmatpush1.bf16.msra.mxu0 %v168
  %191 = vmatprep.subr.bf16.mxu0 0
  %192 = vmatpush1.bf16.msra.mxu0 %v167
  %193 = vmatprep.subr.bf16.mxu0 0
  %194 = vmatpush1.bf16.msra.mxu0 %v166
  %195 = vmatprep.subr.bf16.mxu0 0
  %196 = vmatpush1.bf16.msra.mxu0 %v165
  %197 = vmatprep.subr.bf16.mxu0 0
  %198 = vmatpush2.bf16.msra.mxu0 0
  %199 = vmatprep.subr.bf16.mxu0 0
  %200 = vmatpush2.bf16.msra.mxu0 0
  %201 = vmatprep.subr.bf16.mxu0 0
  %202 = vmatpush2.bf16.msra.mxu0 0
  %203 = vmatprep.subr.bf16.mxu0 0
  %204 = vmatpush2.bf16.msra.mxu0 0
  %205 = vmatprep.subr.bf16.mxu0 0
  %206 = vmatpush2.bf16.msra.mxu0 0
  %207 = vmatprep.subr.bf16.mxu0 0
  %208 = vmatpush2.bf16.msra.mxu0 0
  %209 = vmatprep.subr.bf16.mxu0 0
  %210 = vmatpush2.bf16.msra.mxu0 0
  %211 = vmatprep.subr.bf16.mxu0 0
  %212 = vmatpush2.bf16.msra.mxu0 0
  %213 = vmatprep.mubr.bf16.mxu0 0
  %214 = vmatmul.mubr.bf16.gmra.mxu0 %v117
  %v215 = vpop.f32.mrf.mxu0
  %v216 = vadd.f32 0.0, %v215
  %v217 = vpop.f32.mrf.mxu0
  %v218 = vpop.f32.mrf.mxu0
  %v219 = vadd.f32 0.0, %v218
  %v220 = vpop.f32.mrf.mxu0
  %221 = vmatprep.mubr.bf16.mxu0 0
  %222 = vmatmul.mubr.bf16.gmra.mxu0 %v118
  %v223 = vpop.f32.mrf.mxu0
  %v224 = vadd.f32 0.0, %v223
  %v225 = vpop.f32.mrf.mxu0
  %v226 = vpop.f32.mrf.mxu0
  %v227 = vadd.f32 0.0, %v226
  %v228 = vpop.f32.mrf.mxu0
  %229 = vmatprep.mubr.bf16.mxu0 0
  %230 = vmatmul.mubr.bf16.gmra.mxu0 %v119
  %v231 = vpop.f32.mrf.mxu0
  %v232 = vadd.f32 0.0, %v231
  %v233 = vpop.f32.mrf.mxu0
  %v234 = vpop.f32.mrf.mxu0
  %v235 = vadd.f32 0.0, %v234
  %v236 = vpop.f32.mrf.mxu0
  %237 = vmatprep.mubr.bf16.mxu0 0
  %238 = vmatmul.mubr.bf16.gmra.mxu0 %v120
  %v239 = vpop.f32.mrf.mxu0
  %v240 = vadd.f32 0.0, %v239
  %v241 = vpop.f32.mrf.mxu0
  %v242 = vpop.f32.mrf.mxu0
  %v243 = vadd.f32 0.0, %v242
  %v244 = vpop.f32.mrf.mxu0
  %245 = vmatprep.mubr.bf16.mxu0 0
  %246 = vmatmul.mubr.bf16.gmra.mxu0 %v121
  %v247 = vpop.f32.mrf.mxu0
  %v248 = vadd.f32 0.0, %v247
  %v249 = vpop.f32.mrf.mxu0
  %v250 = vpop.f32.mrf.mxu0
  %v251 = vadd.f32 0.0, %v250
  %v252 = vpop.f32.mrf.mxu0
  %253 = vmatprep.mubr.bf16.mxu0 0
  %254 = vmatmul.mubr.bf16.gmra.mxu0 %v122
  %v255 = vpop.f32.mrf.mxu0
  %v256 = vadd.f32 0.0, %v255
  %v257 = vpop.f32.mrf.mxu0
  %v258 = vpop.f32.mrf.mxu0
  %v259 = vadd.f32 0.0, %v258
  %v260 = vpop.f32.mrf.mxu0
  %261 = vmatprep.mubr.bf16.mxu0 0
  %262 = vmatmul.mubr.bf16.gmra.mxu0 %v123
  %v263 = vpop.f32.mrf.mxu0
  %v264 = vadd.f32 0.0, %v263
  %v265 = vpop.f32.mrf.mxu0
  %v266 = vpop.f32.mrf.mxu0
  %v267 = vadd.f32 0.0, %v266
  %v268 = vpop.f32.mrf.mxu0
  %269 = vmatprep.mubr.bf16.mxu0 0
  %270 = vmatmul.mubr.bf16.gmra.mxu0 %v124
  %v271 = vpop.f32.mrf.mxu0
  %v272 = vadd.f32 0.0, %v271
  %v273 = vpop.f32.mrf.mxu0
  %v274 = vpop.f32.mrf.mxu0
  %v275 = vadd.f32 0.0, %v274
  %v276 = vpop.f32.mrf.mxu0
  %277 = vdwg.mxu0
  %v278 = vpack.c.bf16 %v219, %v216
  %v279 = vpack.c.bf16 %v227, %v224
  %v280 = vpack.c.bf16 %v235, %v232
  %v281 = vpack.c.bf16 %v243, %v240
  %v282 = vpack.c.bf16 %v251, %v248
  %v283 = vpack.c.bf16 %v259, %v256
  %v284 = vpack.c.bf16 %v267, %v264
  %v285 = vpack.c.bf16 %v275, %v272
  %v287 = vlaneseq
  %v288 = vshrl.u32 %v287, 7
  %v289 = vsub.s32 0, %v288
  %v290 = vrot.slane %v84, %v289
  %v308 = vunpack.c.l.b16 %v68
  %v309 = vunpack.c.l.b16 %v69
  %v310 = vunpack.c.l.b16 %v70
  %v311 = vunpack.c.l.b16 %v71
  %v312 = vunpack.c.l.b16 %v72
  %v313 = vunpack.c.l.b16 %v73
  %v314 = vunpack.c.l.b16 %v74
  %v315 = vunpack.c.l.b16 %v75
  %v316 = vunpack.c.l.b16 %v76
  %v317 = vunpack.c.l.b16 %v77
  %v318 = vunpack.c.l.b16 %v78
  %v319 = vunpack.c.l.b16 %v79
  %v320 = vunpack.c.l.b16 %v80
  %v321 = vunpack.c.l.b16 %v81
  %v322 = vunpack.c.l.b16 %v82
  %v323 = vunpack.c.l.b16 %v83
  %v324 = vpack.c.b16 %v309, %v308
  %v325 = vpack.c.b16 %v311, %v310
  %v326 = vpack.c.b16 %v313, %v312
  %v327 = vpack.c.b16 %v315, %v314
  %v328 = vpack.c.b16 %v317, %v316
  %v329 = vpack.c.b16 %v319, %v318
  %v330 = vpack.c.b16 %v321, %v320
  %v331 = vpack.c.b16 %v323, %v322
  %340 = vmatprep.subr.bf16.mxu0 0
  %341 = vmatpush1.bf16.msra.mxu0 %v331
  %342 = vmatprep.subr.bf16.mxu0 0
  %343 = vmatpush1.bf16.msra.mxu0 %v330
  %344 = vmatprep.subr.bf16.mxu0 0
  %345 = vmatpush1.bf16.msra.mxu0 %v329
  %346 = vmatprep.subr.bf16.mxu0 0
  %347 = vmatpush1.bf16.msra.mxu0 %v328
  %348 = vmatprep.subr.bf16.mxu0 0
  %349 = vmatpush1.bf16.msra.mxu0 %v327
  %350 = vmatprep.subr.bf16.mxu0 0
  %351 = vmatpush1.bf16.msra.mxu0 %v326
  %352 = vmatprep.subr.bf16.mxu0 0
  %353 = vmatpush1.bf16.msra.mxu0 %v325
  %354 = vmatprep.subr.bf16.mxu0 0
  %355 = vmatpush1.bf16.msra.mxu0 %v324
  %356 = vmatprep.subr.bf16.mxu0 0
  %357 = vmatpush2.bf16.msra.mxu0 0
  %358 = vmatprep.subr.bf16.mxu0 0
  %359 = vmatpush2.bf16.msra.mxu0 0
  %360 = vmatprep.subr.bf16.mxu0 0
  %361 = vmatpush2.bf16.msra.mxu0 0
  %362 = vmatprep.subr.bf16.mxu0 0
  %363 = vmatpush2.bf16.msra.mxu0 0
  %364 = vmatprep.subr.bf16.mxu0 0
  %365 = vmatpush2.bf16.msra.mxu0 0
  %366 = vmatprep.subr.bf16.mxu0 0
  %367 = vmatpush2.bf16.msra.mxu0 0
  %368 = vmatprep.subr.bf16.mxu0 0
  %369 = vmatpush2.bf16.msra.mxu0 0
  %370 = vmatprep.subr.bf16.mxu0 0
  %371 = vmatpush2.bf16.msra.mxu0 0
  %372 = vmatprep.mubr.bf16.mxu0 0
  %373 = vmatmul.mubr.bf16.gmra.mxu0 %v278
  %v374 = vpop.f32.mrf.mxu0
  %v375 = vadd.f32 %v290, %v374
  %v376 = vpop.f32.mrf.mxu0
  %v377 = vpop.f32.mrf.mxu0
  %v378 = vadd.f32 %v290, %v377
  %v379 = vpop.f32.mrf.mxu0
  %380 = vmatprep.mubr.bf16.mxu0 0
  %381 = vmatmul.mubr.bf16.gmra.mxu0 %v279
  %v382 = vpop.f32.mrf.mxu0
  %v383 = vadd.f32 %v290, %v382
  %v384 = vpop.f32.mrf.mxu0
  %v385 = vpop.f32.mrf.mxu0
  %v386 = vadd.f32 %v290, %v385
  %v387 = vpop.f32.mrf.mxu0
  %388 = vmatprep.mubr.bf16.mxu0 0
  %389 = vmatmul.mubr.bf16.gmra.mxu0 %v280
  %v390 = vpop.f32.mrf.mxu0
  %v391 = vadd.f32 %v290, %v390
  %v392 = vpop.f32.mrf.mxu0
  %v393 = vpop.f32.mrf.mxu0
  %v394 = vadd.f32 %v290, %v393
  %v395 = vpop.f32.mrf.mxu0
  %396 = vmatprep.mubr.bf16.mxu0 0
  %397 = vmatmul.mubr.bf16.gmra.mxu0 %v281
  %v398 = vpop.f32.mrf.mxu0
  %v399 = vadd.f32 %v290, %v398
  %v400 = vpop.f32.mrf.mxu0
  %v401 = vpop.f32.mrf.mxu0
  %v402 = vadd.f32 %v290, %v401
  %v403 = vpop.f32.mrf.mxu0
  %404 = vmatprep.mubr.bf16.mxu0 0
  %405 = vmatmul.mubr.bf16.gmra.mxu0 %v282
  %v406 = vpop.f32.mrf.mxu0
  %v407 = vadd.f32 %v290, %v406
  %v408 = vpop.f32.mrf.mxu0
  %v409 = vpop.f32.mrf.mxu0
  %v410 = vadd.f32 %v290, %v409
  %v411 = vpop.f32.mrf.mxu0
  %412 = vmatprep.mubr.bf16.mxu0 0
  %413 = vmatmul.mubr.bf16.gmra.mxu0 %v283
  %v414 = vpop.f32.mrf.mxu0
  %v415 = vadd.f32 %v290, %v414
  %v416 = vpop.f32.mrf.mxu0
  %v417 = vpop.f32.mrf.mxu0
  %v418 = vadd.f32 %v290, %v417
  %v419 = vpop.f32.mrf.mxu0
  %420 = vmatprep.mubr.bf16.mxu0 0
  %421 = vmatmul.mubr.bf16.gmra.mxu0 %v284
  %v422 = vpop.f32.mrf.mxu0
  %v423 = vadd.f32 %v290, %v422
  %v424 = vpop.f32.mrf.mxu0
  %v425 = vpop.f32.mrf.mxu0
  %v426 = vadd.f32 %v290, %v425
  %v427 = vpop.f32.mrf.mxu0
  %428 = vmatprep.mubr.bf16.mxu0 0
  %429 = vmatmul.mubr.bf16.gmra.mxu0 %v285
  %v430 = vpop.f32.mrf.mxu0
  %v431 = vadd.f32 %v290, %v430
  %v432 = vpop.f32.mrf.mxu0
  %v433 = vpop.f32.mrf.mxu0
  %v434 = vadd.f32 %v290, %v433
  %v435 = vpop.f32.mrf.mxu0
  %436 = vdwg.mxu0
  %v437 = vmax.f32 %v375, 0.0
  %v438 = vmax.f32 %v378, 0.0
  %v439 = vmax.f32 %v383, 0.0
  %v440 = vmax.f32 %v386, 0.0
  %v441 = vmax.f32 %v391, 0.0
  %v442 = vmax.f32 %v394, 0.0
  %v443 = vmax.f32 %v399, 0.0
  %v444 = vmax.f32 %v402, 0.0
  %v445 = vmax.f32 %v407, 0.0
  %v446 = vmax.f32 %v410, 0.0
  %v447 = vmax.f32 %v415, 0.0
  %v448 = vmax.f32 %v418, 0.0
  %v449 = vmax.f32 %v423, 0.0
  %v450 = vmax.f32 %v426, 0.0
  %v451 = vmax.f32 %v431, 0.0
  %v452 = vmax.f32 %v434, 0.0
  %v453 = vpack.c.bf16 %v438, %v437
  %v454 = vpack.c.bf16 %v440, %v439
  %v455 = vpack.c.bf16 %v442, %v441
  %v456 = vpack.c.bf16 %v444, %v443
  %v457 = vpack.c.bf16 %v446, %v445
  %v458 = vpack.c.bf16 %v448, %v447
  %v459 = vpack.c.bf16 %v450, %v449
  %v460 = vpack.c.bf16 %v452, %v451
  %v461 = vld [vmem:[%s3] sm:$0xf]
  %v462 = vld [vmem:[%s3 + $0x4] sm:$0xf]
  %v463 = vld [vmem:[%s3 + $0x8] sm:$0xf]
  %v464 = vld [vmem:[%s3 + $0xc] sm:$0xf]
  %v465 = vld [vmem:[%s3 + $0x10] sm:$0xf]
  %v466 = vld [vmem:[%s3 + $0x14] sm:$0xf]
  %v467 = vld [vmem:[%s3 + $0x18] sm:$0xf]
  %v468 = vld [vmem:[%s3 + $0x1c] sm:$0xf]
  %v469 = vld [vmem:[%s3 + $0x20] sm:$0xf]
  %v470 = vld [vmem:[%s3 + $0x24] sm:$0xf]
  %v471 = vld [vmem:[%s3 + $0x28] sm:$0xf]
  %v472 = vld [vmem:[%s3 + $0x2c] sm:$0xf]
  %v473 = vld [vmem:[%s3 + $0x30] sm:$0xf]
  %v474 = vld [vmem:[%s3 + $0x34] sm:$0xf]
  %v475 = vld [vmem:[%s3 + $0x38] sm:$0xf]
  %v476 = vld [vmem:[%s3 + $0x3c] sm:$0xf]
  %v477 = vld [vmem:[%s7] sm:$0x1]
  %478 = vmatprep.subr.bf16.mxu0 0
  %479 = vmatpush1.bf16.msra.mxu0 %v460
  %480 = vmatprep.subr.bf16.mxu0 0
  %481 = vmatpush1.bf16.msra.mxu0 %v459
  %482 = vmatprep.subr.bf16.mxu0 0
  %483 = vmatpush1.bf16.msra.mxu0 %v458
  %484 = vmatprep.subr.bf16.mxu0 0
  %485 = vmatpush1.bf16.msra.mxu0 %v457
  %486 = vmatprep.subr.bf16.mxu0 0
  %487 = vmatpush1.bf16.msra.mxu0 %v456
  %488 = vmatprep.subr.bf16.mxu0 0
  %489 = vmatpush1.bf16.msra.mxu0 %v455
  %490 = vmatprep.subr.bf16.mxu0 0
  %491 = vmatpush1.bf16.msra.mxu0 %v454
  %492 = vmatprep.subr.bf16.mxu0 0
  %493 = vmatpush1.bf16.msra.mxu0 %v453
  %494 = vmatprep.subr.bf16.mxu0 0
  %495 = vmatpush2.bf16.msra.mxu0 0
  %496 = vmatprep.subr.bf16.mxu0 0
  %497 = vmatpush2.bf16.msra.mxu0 0
  %498 = vmatprep.subr.bf16.mxu0 0
  %499 = vmatpush2.bf16.msra.mxu0 0
  %500 = vmatprep.subr.bf16.mxu0 0
  %501 = vmatpush2.bf16.msra.mxu0 0
  %502 = vmatprep.subr.bf16.mxu0 0
  %503 = vmatpush2.bf16.msra.mxu0 0
  %504 = vmatprep.subr.bf16.mxu0 0
  %505 = vmatpush2.bf16.msra.mxu0 0
  %506 = vmatprep.subr.bf16.mxu0 0
  %507 = vmatpush2.bf16.msra.mxu0 0
  %508 = vmatprep.subr.bf16.mxu0 0
  %509 = vmatpush2.bf16.msra.mxu0 0
  %510 = vmatprep.mubr.bf16.mxu0 0
  %511 = vmatmul.mubr.bf16.gmra.mxu0 %v117
  %v512 = vpop.f32.mrf.mxu0
  %v513 = vadd.f32 0.0, %v512
  %v514 = vpop.f32.mrf.mxu0
  %v515 = vpop.f32.mrf.mxu0
  %v516 = vadd.f32 0.0, %v515
  %v517 = vpop.f32.mrf.mxu0
  %518 = vmatprep.mubr.bf16.mxu0 0
  %519 = vmatmul.mubr.bf16.gmra.mxu0 %v118
  %v520 = vpop.f32.mrf.mxu0
  %v521 = vadd.f32 0.0, %v520
  %v522 = vpop.f32.mrf.mxu0
  %v523 = vpop.f32.mrf.mxu0
  %v524 = vadd.f32 0.0, %v523
  %v525 = vpop.f32.mrf.mxu0
  %526 = vmatprep.mubr.bf16.mxu0 0
  %527 = vmatmul.mubr.bf16.gmra.mxu0 %v119
  %v528 = vpop.f32.mrf.mxu0
  %v529 = vadd.f32 0.0, %v528
  %v530 = vpop.f32.mrf.mxu0
  %v531 = vpop.f32.mrf.mxu0
  %v532 = vadd.f32 0.0, %v531
  %v533 = vpop.f32.mrf.mxu0
  %534 = vmatprep.mubr.bf16.mxu0 0
  %535 = vmatmul.mubr.bf16.gmra.mxu0 %v120
  %v536 = vpop.f32.mrf.mxu0
  %v537 = vadd.f32 0.0, %v536
  %v538 = vpop.f32.mrf.mxu0
  %v539 = vpop.f32.mrf.mxu0
  %v540 = vadd.f32 0.0, %v539
  %v541 = vpop.f32.mrf.mxu0
  %542 = vmatprep.mubr.bf16.mxu0 0
  %543 = vmatmul.mubr.bf16.gmra.mxu0 %v121
  %v544 = vpop.f32.mrf.mxu0
  %v545 = vadd.f32 0.0, %v544
  %v546 = vpop.f32.mrf.mxu0
  %v547 = vpop.f32.mrf.mxu0
  %v548 = vadd.f32 0.0, %v547
  %v549 = vpop.f32.mrf.mxu0
  %550 = vmatprep.mubr.bf16.mxu0 0
  %551 = vmatmul.mubr.bf16.gmra.mxu0 %v122
  %v552 = vpop.f32.mrf.mxu0
  %v553 = vadd.f32 0.0, %v552
  %v554 = vpop.f32.mrf.mxu0
  %v555 = vpop.f32.mrf.mxu0
  %v556 = vadd.f32 0.0, %v555
  %v557 = vpop.f32.mrf.mxu0
  %558 = vmatprep.mubr.bf16.mxu0 0
  %559 = vmatmul.mubr.bf16.gmra.mxu0 %v123
  %v560 = vpop.f32.mrf.mxu0
  %v561 = vadd.f32 0.0, %v560
  %v562 = vpop.f32.mrf.mxu0
  %v563 = vpop.f32.mrf.mxu0
  %v564 = vadd.f32 0.0, %v563
  %v565 = vpop.f32.mrf.mxu0
  %566 = vmatprep.mubr.bf16.mxu0 0
  %567 = vmatmul.mubr.bf16.gmra.mxu0 %v124
  %v568 = vpop.f32.mrf.mxu0
  %v569 = vadd.f32 0.0, %v568
  %v570 = vpop.f32.mrf.mxu0
  %v571 = vpop.f32.mrf.mxu0
  %v572 = vadd.f32 0.0, %v571
  %v573 = vpop.f32.mrf.mxu0
  %574 = vdwg.mxu0
  %v575 = vpack.c.bf16 %v516, %v513
  %v576 = vpack.c.bf16 %v524, %v521
  %v577 = vpack.c.bf16 %v532, %v529
  %v578 = vpack.c.bf16 %v540, %v537
  %v579 = vpack.c.bf16 %v548, %v545
  %v580 = vpack.c.bf16 %v556, %v553
  %v581 = vpack.c.bf16 %v564, %v561
  %v582 = vpack.c.bf16 %v572, %v569
  %v584 = vlaneseq
  %v585 = vshrl.u32 %v584, 7
  %v586 = vsub.s32 0, %v585
  %v587 = vrot.slane %v477, %v586
  %v605 = vunpack.c.l.b16 %v461
  %v606 = vunpack.c.l.b16 %v462
  %v607 = vunpack.c.l.b16 %v463
  %v608 = vunpack.c.l.b16 %v464
  %v609 = vunpack.c.l.b16 %v465
  %v610 = vunpack.c.l.b16 %v466
  %v611 = vunpack.c.l.b16 %v467
  %v612 = vunpack.c.l.b16 %v468
  %v613 = vunpack.c.l.b16 %v469
  %v614 = vunpack.c.l.b16 %v470
  %v615 = vunpack.c.l.b16 %v471
  %v616 = vunpack.c.l.b16 %v472
  %v617 = vunpack.c.l.b16 %v473
  %v618 = vunpack.c.l.b16 %v474
  %v619 = vunpack.c.l.b16 %v475
  %v620 = vunpack.c.l.b16 %v476
  %v621 = vpack.c.b16 %v606, %v605
  %v622 = vpack.c.b16 %v608, %v607
  %v623 = vpack.c.b16 %v610, %v609
  %v624 = vpack.c.b16 %v612, %v611
  %v625 = vpack.c.b16 %v614, %v613
  %v626 = vpack.c.b16 %v616, %v615
  %v627 = vpack.c.b16 %v618, %v617
  %v628 = vpack.c.b16 %v620, %v619
  %637 = vmatprep.subr.bf16.mxu0 0
  %638 = vmatpush1.bf16.msra.mxu0 %v628
  %639 = vmatprep.subr.bf16.mxu0 0
  %640 = vmatpush1.bf16.msra.mxu0 %v627
  %641 = vmatprep.subr.bf16.mxu0 0
  %642 = vmatpush1.bf16.msra.mxu0 %v626
  %643 = vmatprep.subr.bf16.mxu0 0
  %644 = vmatpush1.bf16.msra.mxu0 %v625
  %645 = vmatprep.subr.bf16.mxu0 0
  %646 = vmatpush1.bf16.msra.mxu0 %v624
  %647 = vmatprep.subr.bf16.mxu0 0
  %648 = vmatpush1.bf16.msra.mxu0 %v623
  %649 = vmatprep.subr.bf16.mxu0 0
  %650 = vmatpush1.bf16.msra.mxu0 %v622
  %651 = vmatprep.subr.bf16.mxu0 0
  %652 = vmatpush1.bf16.msra.mxu0 %v621
  %653 = vmatprep.subr.bf16.mxu0 0
  %654 = vmatpush2.bf16.msra.mxu0 0
  %655 = vmatprep.subr.bf16.mxu0 0
  %656 = vmatpush2.bf16.msra.mxu0 0
  %657 = vmatprep.subr.bf16.mxu0 0
  %658 = vmatpush2.bf16.msra.mxu0 0
  %659 = vmatprep.subr.bf16.mxu0 0
  %660 = vmatpush2.bf16.msra.mxu0 0
  %661 = vmatprep.subr.bf16.mxu0 0
  %662 = vmatpush2.bf16.msra.mxu0 0
  %663 = vmatprep.subr.bf16.mxu0 0
  %664 = vmatpush2.bf16.msra.mxu0 0
  %665 = vmatprep.subr.bf16.mxu0 0
  %666 = vmatpush2.bf16.msra.mxu0 0
  %667 = vmatprep.subr.bf16.mxu0 0
  %668 = vmatpush2.bf16.msra.mxu0 0
  %669 = vmatprep.mubr.bf16.mxu0 0
  %670 = vmatmul.mubr.bf16.gmra.mxu0 %v575
  %v671 = vpop.f32.mrf.mxu0
  %v672 = vadd.f32 %v587, %v671
  %v673 = vpop.f32.mrf.mxu0
  %v674 = vpop.f32.mrf.mxu0
  %v675 = vadd.f32 %v587, %v674
  %v676 = vpop.f32.mrf.mxu0
  %677 = vmatprep.mubr.bf16.mxu0 0
  %678 = vmatmul.mubr.bf16.gmra.mxu0 %v576
  %v679 = vpop.f32.mrf.mxu0
  %v680 = vadd.f32 %v587, %v679
  %v681 = vpop.f32.mrf.mxu0
  %v682 = vpop.f32.mrf.mxu0
  %v683 = vadd.f32 %v587, %v682
  %v684 = vpop.f32.mrf.mxu0
  %685 = vmatprep.mubr.bf16.mxu0 0
  %686 = vmatmul.mubr.bf16.gmra.mxu0 %v577
  %v687 = vpop.f32.mrf.mxu0
  %v688 = vadd.f32 %v587, %v687
  %v689 = vpop.f32.mrf.mxu0
  %v690 = vpop.f32.mrf.mxu0
  %v691 = vadd.f32 %v587, %v690
  %v692 = vpop.f32.mrf.mxu0
  %693 = vmatprep.mubr.bf16.mxu0 0
  %694 = vmatmul.mubr.bf16.gmra.mxu0 %v578
  %v695 = vpop.f32.mrf.mxu0
  %v696 = vadd.f32 %v587, %v695
  %v697 = vpop.f32.mrf.mxu0
  %v698 = vpop.f32.mrf.mxu0
  %v699 = vadd.f32 %v587, %v698
  %v700 = vpop.f32.mrf.mxu0
  %701 = vmatprep.mubr.bf16.mxu0 0
  %702 = vmatmul.mubr.bf16.gmra.mxu0 %v579
  %v703 = vpop.f32.mrf.mxu0
  %v704 = vadd.f32 %v587, %v703
  %v705 = vpop.f32.mrf.mxu0
  %v706 = vpop.f32.mrf.mxu0
  %v707 = vadd.f32 %v587, %v706
  %v708 = vpop.f32.mrf.mxu0
  %709 = vmatprep.mubr.bf16.mxu0 0
  %710 = vmatmul.mubr.bf16.gmra.mxu0 %v580
  %v711 = vpop.f32.mrf.mxu0
  %v712 = vadd.f32 %v587, %v711
  %v713 = vpop.f32.mrf.mxu0
  %v714 = vpop.f32.mrf.mxu0
  %v715 = vadd.f32 %v587, %v714
  %v716 = vpop.f32.mrf.mxu0
  %717 = vmatprep.mubr.bf16.mxu0 0
  %718 = vmatmul.mubr.bf16.gmra.mxu0 %v581
  %v719 = vpop.f32.mrf.mxu0
  %v720 = vadd.f32 %v587, %v719
  %v721 = vpop.f32.mrf.mxu0
  %v722 = vpop.f32.mrf.mxu0
  %v723 = vadd.f32 %v587, %v722
  %v724 = vpop.f32.mrf.mxu0
  %725 = vmatprep.mubr.bf16.mxu0 0
  %726 = vmatmul.mubr.bf16.gmra.mxu0 %v582
  %v727 = vpop.f32.mrf.mxu0
  %v728 = vadd.f32 %v587, %v727
  %v729 = vpop.f32.mrf.mxu0
  %v730 = vpop.f32.mrf.mxu0
  %v731 = vadd.f32 %v587, %v730
  %v732 = vpop.f32.mrf.mxu0
  %733 = vdwg.mxu0
  %v734 = vmax.f32 %v672, 0.0
  %v735 = vmax.f32 %v675, 0.0
  %v736 = vmax.f32 %v680, 0.0
  %v737 = vmax.f32 %v683, 0.0
  %v738 = vmax.f32 %v688, 0.0
  %v739 = vmax.f32 %v691, 0.0
  %v740 = vmax.f32 %v696, 0.0
  %v741 = vmax.f32 %v699, 0.0
  %v742 = vmax.f32 %v704, 0.0
  %v743 = vmax.f32 %v707, 0.0
  %v744 = vmax.f32 %v712, 0.0
  %v745 = vmax.f32 %v715, 0.0
  %v746 = vmax.f32 %v720, 0.0
  %v747 = vmax.f32 %v723, 0.0
  %v748 = vmax.f32 %v728, 0.0
  %v749 = vmax.f32 %v731, 0.0
  %v750 = vpack.c.bf16 %v735, %v734
  %v751 = vpack.c.bf16 %v737, %v736
  %v752 = vpack.c.bf16 %v739, %v738
  %v753 = vpack.c.bf16 %v741, %v740
  %v754 = vpack.c.bf16 %v743, %v742
  %v755 = vpack.c.bf16 %v745, %v744
  %v756 = vpack.c.bf16 %v747, %v746
  %v757 = vpack.c.bf16 %v749, %v748
  %v758 = vld [vmem:[%s4] sm:$0xf]
  %v759 = vld [vmem:[%s4 + $0x4] sm:$0xf]
  %v760 = vld [vmem:[%s4 + $0x8] sm:$0xf]
  %v761 = vld [vmem:[%s4 + $0xc] sm:$0xf]
  %v762 = vld [vmem:[%s4 + $0x10] sm:$0xf]
  %v763 = vld [vmem:[%s4 + $0x14] sm:$0xf]
  %v764 = vld [vmem:[%s4 + $0x18] sm:$0xf]
  %v765 = vld [vmem:[%s4 + $0x1c] sm:$0xf]
  %v766 = vld [vmem:[%s4 + $0x20] sm:$0xf]
  %v767 = vld [vmem:[%s4 + $0x24] sm:$0xf]
  %v768 = vld [vmem:[%s4 + $0x28] sm:$0xf]
  %v769 = vld [vmem:[%s4 + $0x2c] sm:$0xf]
  %v770 = vld [vmem:[%s4 + $0x30] sm:$0xf]
  %v771 = vld [vmem:[%s4 + $0x34] sm:$0xf]
  %v772 = vld [vmem:[%s4 + $0x38] sm:$0xf]
  %v773 = vld [vmem:[%s4 + $0x3c] sm:$0xf]
  %v774 = vld [vmem:[%s8] sm:$0x1]
  %775 = vmatprep.subr.bf16.mxu0 0
  %776 = vmatpush1.bf16.msra.mxu0 %v757
  %777 = vmatprep.subr.bf16.mxu0 0
  %778 = vmatpush1.bf16.msra.mxu0 %v756
  %779 = vmatprep.subr.bf16.mxu0 0
  %780 = vmatpush1.bf16.msra.mxu0 %v755
  %781 = vmatprep.subr.bf16.mxu0 0
  %782 = vmatpush1.bf16.msra.mxu0 %v754
  %783 = vmatprep.subr.bf16.mxu0 0
  %784 = vmatpush1.bf16.msra.mxu0 %v753
  %785 = vmatprep.subr.bf16.mxu0 0
  %786 = vmatpush1.bf16.msra.mxu0 %v752
  %787 = vmatprep.subr.bf16.mxu0 0
  %788 = vmatpush1.bf16.msra.mxu0 %v751
  %789 = vmatprep.subr.bf16.mxu0 0
  %790 = vmatpush1.bf16.msra.mxu0 %v750
  %791 = vmatprep.subr.bf16.mxu0 0
  %792 = vmatpush2.bf16.msra.mxu0 0
  %793 = vmatprep.subr.bf16.mxu0 0
  %794 = vmatpush2.bf16.msra.mxu0 0
  %795 = vmatprep.subr.bf16.mxu0 0
  %796 = vmatpush2.bf16.msra.mxu0 0
  %797 = vmatprep.subr.bf16.mxu0 0
  %798 = vmatpush2.bf16.msra.mxu0 0
  %799 = vmatprep.subr.bf16.mxu0 0
  %800 = vmatpush2.bf16.msra.mxu0 0
  %801 = vmatprep.subr.bf16.mxu0 0
  %802 = vmatpush2.bf16.msra.mxu0 0
  %803 = vmatprep.subr.bf16.mxu0 0
  %804 = vmatpush2.bf16.msra.mxu0 0
  %805 = vmatprep.subr.bf16.mxu0 0
  %806 = vmatpush2.bf16.msra.mxu0 0
  %807 = vmatprep.mubr.bf16.mxu0 0
  %808 = vmatmul.mubr.bf16.gmra.mxu0 %v117
  %v809 = vpop.f32.mrf.mxu0
  %v810 = vadd.f32 0.0, %v809
  %v811 = vpop.f32.mrf.mxu0
  %v812 = vpop.f32.mrf.mxu0
  %v813 = vadd.f32 0.0, %v812
  %v814 = vpop.f32.mrf.mxu0
  %815 = vmatprep.mubr.bf16.mxu0 0
  %816 = vmatmul.mubr.bf16.gmra.mxu0 %v118
  %v817 = vpop.f32.mrf.mxu0
  %v818 = vadd.f32 0.0, %v817
  %v819 = vpop.f32.mrf.mxu0
  %v820 = vpop.f32.mrf.mxu0
  %v821 = vadd.f32 0.0, %v820
  %v822 = vpop.f32.mrf.mxu0
  %823 = vmatprep.mubr.bf16.mxu0 0
  %824 = vmatmul.mubr.bf16.gmra.mxu0 %v119
  %v825 = vpop.f32.mrf.mxu0
  %v826 = vadd.f32 0.0, %v825
  %v827 = vpop.f32.mrf.mxu0
  %v828 = vpop.f32.mrf.mxu0
  %v829 = vadd.f32 0.0, %v828
  %v830 = vpop.f32.mrf.mxu0
  %831 = vmatprep.mubr.bf16.mxu0 0
  %832 = vmatmul.mubr.bf16.gmra.mxu0 %v120
  %v833 = vpop.f32.mrf.mxu0
  %v834 = vadd.f32 0.0, %v833
  %v835 = vpop.f32.mrf.mxu0
  %v836 = vpop.f32.mrf.mxu0
  %v837 = vadd.f32 0.0, %v836
  %v838 = vpop.f32.mrf.mxu0
  %839 = vmatprep.mubr.bf16.mxu0 0
  %840 = vmatmul.mubr.bf16.gmra.mxu0 %v121
  %v841 = vpop.f32.mrf.mxu0
  %v842 = vadd.f32 0.0, %v841
  %v843 = vpop.f32.mrf.mxu0
  %v844 = vpop.f32.mrf.mxu0
  %v845 = vadd.f32 0.0, %v844
  %v846 = vpop.f32.mrf.mxu0
  %847 = vmatprep.mubr.bf16.mxu0 0
  %848 = vmatmul.mubr.bf16.gmra.mxu0 %v122
  %v849 = vpop.f32.mrf.mxu0
  %v850 = vadd.f32 0.0, %v849
  %v851 = vpop.f32.mrf.mxu0
  %v852 = vpop.f32.mrf.mxu0
  %v853 = vadd.f32 0.0, %v852
  %v854 = vpop.f32.mrf.mxu0
  %855 = vmatprep.mubr.bf16.mxu0 0
  %856 = vmatmul.mubr.bf16.gmra.mxu0 %v123
  %v857 = vpop.f32.mrf.mxu0
  %v858 = vadd.f32 0.0, %v857
  %v859 = vpop.f32.mrf.mxu0
  %v860 = vpop.f32.mrf.mxu0
  %v861 = vadd.f32 0.0, %v860
  %v862 = vpop.f32.mrf.mxu0
  %863 = vmatprep.mubr.bf16.mxu0 0
  %864 = vmatmul.mubr.bf16.gmra.mxu0 %v124
  %v865 = vpop.f32.mrf.mxu0
  %v866 = vadd.f32 0.0, %v865
  %v867 = vpop.f32.mrf.mxu0
  %v868 = vpop.f32.mrf.mxu0
  %v869 = vadd.f32 0.0, %v868
  %v870 = vpop.f32.mrf.mxu0
  %871 = vdwg.mxu0
  %v872 = vpack.c.bf16 %v813, %v810
  %v873 = vpack.c.bf16 %v821, %v818
  %v874 = vpack.c.bf16 %v829, %v826
  %v875 = vpack.c.bf16 %v837, %v834
  %v876 = vpack.c.bf16 %v845, %v842
  %v877 = vpack.c.bf16 %v853, %v850
  %v878 = vpack.c.bf16 %v861, %v858
  %v879 = vpack.c.bf16 %v869, %v866
  %v881 = vlaneseq
  %v882 = vshrl.u32 %v881, 7
  %v883 = vsub.s32 0, %v882
  %v884 = vrot.slane %v774, %v883
  %v902 = vunpack.c.l.b16 %v758
  %v903 = vunpack.c.l.b16 %v759
  %v904 = vunpack.c.l.b16 %v760
  %v905 = vunpack.c.l.b16 %v761
  %v906 = vunpack.c.l.b16 %v762
  %v907 = vunpack.c.l.b16 %v763
  %v908 = vunpack.c.l.b16 %v764
  %v909 = vunpack.c.l.b16 %v765
  %v910 = vunpack.c.l.b16 %v766
  %v911 = vunpack.c.l.b16 %v767
  %v912 = vunpack.c.l.b16 %v768
  %v913 = vunpack.c.l.b16 %v769
  %v914 = vunpack.c.l.b16 %v770
  %v915 = vunpack.c.l.b16 %v771
  %v916 = vunpack.c.l.b16 %v772
  %v917 = vunpack.c.l.b16 %v773
  %v918 = vpack.c.b16 %v903, %v902
  %v919 = vpack.c.b16 %v905, %v904
  %v920 = vpack.c.b16 %v907, %v906
  %v921 = vpack.c.b16 %v909, %v908
  %v922 = vpack.c.b16 %v911, %v910
  %v923 = vpack.c.b16 %v913, %v912
  %v924 = vpack.c.b16 %v915, %v914
  %v925 = vpack.c.b16 %v917, %v916
  %934 = vmatprep.subr.bf16.mxu0 0
  %935 = vmatpush1.bf16.msra.mxu0 %v925
  %936 = vmatprep.subr.bf16.mxu0 0
  %937 = vmatpush1.bf16.msra.mxu0 %v924
  %938 = vmatprep.subr.bf16.mxu0 0
  %939 = vmatpush1.bf16.msra.mxu0 %v923
  %940 = vmatprep.subr.bf16.mxu0 0
  %941 = vmatpush1.bf16.msra.mxu0 %v922
  %942 = vmatprep.subr.bf16.mxu0 0
  %943 = vmatpush1.bf16.msra.mxu0 %v921
  %944 = vmatprep.subr.bf16.mxu0 0
  %945 = vmatpush1.bf16.msra.mxu0 %v920
  %946 = vmatprep.subr.bf16.mxu0 0
  %947 = vmatpush1.bf16.msra.mxu0 %v919
  %948 = vmatprep.subr.bf16.mxu0 0
  %949 = vmatpush1.bf16.msra.mxu0 %v918
  %950 = vmatprep.subr.bf16.mxu0 0
  %951 = vmatpush2.bf16.msra.mxu0 0
  %952 = vmatprep.subr.bf16.mxu0 0
  %953 = vmatpush2.bf16.msra.mxu0 0
  %954 = vmatprep.subr.bf16.mxu0 0
  %955 = vmatpush2.bf16.msra.mxu0 0
  %956 = vmatprep.subr.bf16.mxu0 0
  %957 = vmatpush2.bf16.msra.mxu0 0
  %958 = vmatprep.subr.bf16.mxu0 0
  %959 = vmatpush2.bf16.msra.mxu0 0
  %960 = vmatprep.subr.bf16.mxu0 0
  %961 = vmatpush2.bf16.msra.mxu0 0
  %962 = vmatprep.subr.bf16.mxu0 0
  %963 = vmatpush2.bf16.msra.mxu0 0
  %964 = vmatprep.subr.bf16.mxu0 0
  %965 = vmatpush2.bf16.msra.mxu0 0
  %966 = vmatprep.mubr.bf16.mxu0 0
  %967 = vmatmul.mubr.bf16.gmra.mxu0 %v872
  %v968 = vpop.f32.mrf.mxu0
  %v969 = vadd.f32 %v884, %v968
  %v970 = vpop.f32.mrf.mxu0
  %v971 = vpop.f32.mrf.mxu0
  %v972 = vadd.f32 %v884, %v971
  %v973 = vpop.f32.mrf.mxu0
  %974 = vmatprep.mubr.bf16.mxu0 0
  %975 = vmatmul.mubr.bf16.gmra.mxu0 %v873
  %v976 = vpop.f32.mrf.mxu0
  %v977 = vadd.f32 %v884, %v976
  %v978 = vpop.f32.mrf.mxu0
  %v979 = vpop.f32.mrf.mxu0
  %v980 = vadd.f32 %v884, %v979
  %v981 = vpop.f32.mrf.mxu0
  %982 = vmatprep.mubr.bf16.mxu0 0
  %983 = vmatmul.mubr.bf16.gmra.mxu0 %v874
  %v984 = vpop.f32.mrf.mxu0
  %v985 = vadd.f32 %v884, %v984
  %v986 = vpop.f32.mrf.mxu0
  %v987 = vpop.f32.mrf.mxu0
  %v988 = vadd.f32 %v884, %v987
  %v989 = vpop.f32.mrf.mxu0
  %990 = vmatprep.mubr.bf16.mxu0 0
  %991 = vmatmul.mubr.bf16.gmra.mxu0 %v875
  %v992 = vpop.f32.mrf.mxu0
  %v993 = vadd.f32 %v884, %v992
  %v994 = vpop.f32.mrf.mxu0
  %v995 = vpop.f32.mrf.mxu0
  %v996 = vadd.f32 %v884, %v995
  %v997 = vpop.f32.mrf.mxu0
  %998 = vmatprep.mubr.bf16.mxu0 0
  %999 = vmatmul.mubr.bf16.gmra.mxu0 %v876
  %v1000 = vpop.f32.mrf.mxu0
  %v1001 = vadd.f32 %v884, %v1000
  %v1002 = vpop.f32.mrf.mxu0
  %v1003 = vpop.f32.mrf.mxu0
  %v1004 = vadd.f32 %v884, %v1003
  %v1005 = vpop.f32.mrf.mxu0
  %1006 = vmatprep.mubr.bf16.mxu0 0
  %1007 = vmatmul.mubr.bf16.gmra.mxu0 %v877
  %v1008 = vpop.f32.mrf.mxu0
  %v1009 = vadd.f32 %v884, %v1008
  %v1010 = vpop.f32.mrf.mxu0
  %v1011 = vpop.f32.mrf.mxu0
  %v1012 = vadd.f32 %v884, %v1011
  %v1013 = vpop.f32.mrf.mxu0
  %1014 = vmatprep.mubr.bf16.mxu0 0
  %1015 = vmatmul.mubr.bf16.gmra.mxu0 %v878
  %v1016 = vpop.f32.mrf.mxu0
  %v1017 = vadd.f32 %v884, %v1016
  %v1018 = vpop.f32.mrf.mxu0
  %v1019 = vpop.f32.mrf.mxu0
  %v1020 = vadd.f32 %v884, %v1019
  %v1021 = vpop.f32.mrf.mxu0
  %1022 = vmatprep.mubr.bf16.mxu0 0
  %1023 = vmatmul.mubr.bf16.gmra.mxu0 %v879
  %v1024 = vpop.f32.mrf.mxu0
  %v1025 = vadd.f32 %v884, %v1024
  %v1026 = vpop.f32.mrf.mxu0
  %v1027 = vpop.f32.mrf.mxu0
  %v1028 = vadd.f32 %v884, %v1027
  %v1029 = vpop.f32.mrf.mxu0
  %1030 = vdwg.mxu0
  %v1031 = vmax.f32 %v969, 0.0
  %v1032 = vmax.f32 %v972, 0.0
  %v1033 = vmax.f32 %v977, 0.0
  %v1034 = vmax.f32 %v980, 0.0
  %v1035 = vmax.f32 %v985, 0.0
  %v1036 = vmax.f32 %v988, 0.0
  %v1037 = vmax.f32 %v993, 0.0
  %v1038 = vmax.f32 %v996, 0.0
  %v1039 = vmax.f32 %v1001, 0.0
  %v1040 = vmax.f32 %v1004, 0.0
  %v1041 = vmax.f32 %v1009, 0.0
  %v1042 = vmax.f32 %v1012, 0.0
  %v1043 = vmax.f32 %v1017, 0.0
  %v1044 = vmax.f32 %v1020, 0.0
  %v1045 = vmax.f32 %v1025, 0.0
  %v1046 = vmax.f32 %v1028, 0.0
  %v1047 = vpack.c.bf16 %v1032, %v1031
  %v1048 = vpack.c.bf16 %v1034, %v1033
  %v1049 = vpack.c.bf16 %v1036, %v1035
  %v1050 = vpack.c.bf16 %v1038, %v1037
  %v1051 = vpack.c.bf16 %v1040, %v1039
  %v1052 = vpack.c.bf16 %v1042, %v1041
  %v1053 = vpack.c.bf16 %v1044, %v1043
  %v1054 = vpack.c.bf16 %v1046, %v1045
  %v1055 = vld [vmem:[%s5] sm:$0xf]
  %v1056 = vld [vmem:[%s5 + $0x4] sm:$0xf]
  %v1057 = vld [vmem:[%s5 + $0x8] sm:$0xf]
  %v1058 = vld [vmem:[%s5 + $0xc] sm:$0xf]
  %v1059 = vld [vmem:[%s5 + $0x10] sm:$0xf]
  %v1060 = vld [vmem:[%s5 + $0x14] sm:$0xf]
  %v1061 = vld [vmem:[%s5 + $0x18] sm:$0xf]
  %v1062 = vld [vmem:[%s5 + $0x1c] sm:$0xf]
  %v1063 = vld [vmem:[%s5 + $0x20] sm:$0xf]
  %v1064 = vld [vmem:[%s5 + $0x24] sm:$0xf]
  %v1065 = vld [vmem:[%s5 + $0x28] sm:$0xf]
  %v1066 = vld [vmem:[%s5 + $0x2c] sm:$0xf]
  %v1067 = vld [vmem:[%s5 + $0x30] sm:$0xf]
  %v1068 = vld [vmem:[%s5 + $0x34] sm:$0xf]
  %v1069 = vld [vmem:[%s5 + $0x38] sm:$0xf]
  %v1070 = vld [vmem:[%s5 + $0x3c] sm:$0xf]
  %v1071 = vld [vmem:[%s9] sm:$0x1]
  %1072 = vmatprep.subr.bf16.mxu0 0
  %1073 = vmatpush1.bf16.msra.mxu0 %v1054
  %1074 = vmatprep.subr.bf16.mxu0 0
  %1075 = vmatpush1.bf16.msra.mxu0 %v1053
  %1076 = vmatprep.subr.bf16.mxu0 0
  %1077 = vmatpush1.bf16.msra.mxu0 %v1052
  %1078 = vmatprep.subr.bf16.mxu0 0
  %1079 = vmatpush1.bf16.msra.mxu0 %v1051
  %1080 = vmatprep.subr.bf16.mxu0 0
  %1081 = vmatpush1.bf16.msra.mxu0 %v1050
  %1082 = vmatprep.subr.bf16.mxu0 0
  %1083 = vmatpush1.bf16.msra.mxu0 %v1049
  %1084 = vmatprep.subr.bf16.mxu0 0
  %1085 = vmatpush1.bf16.msra.mxu0 %v1048
  %1086 = vmatprep.subr.bf16.mxu0 0
  %1087 = vmatpush1.bf16.msra.mxu0 %v1047
  %1088 = vmatprep.subr.bf16.mxu0 0
  %1089 = vmatpush2.bf16.msra.mxu0 0
  %1090 = vmatprep.subr.bf16.mxu0 0
  %1091 = vmatpush2.bf16.msra.mxu0 0
  %1092 = vmatprep.subr.bf16.mxu0 0
  %1093 = vmatpush2.bf16.msra.mxu0 0
  %1094 = vmatprep.subr.bf16.mxu0 0
  %1095 = vmatpush2.bf16.msra.mxu0 0
  %1096 = vmatprep.subr.bf16.mxu0 0
  %1097 = vmatpush2.bf16.msra.mxu0 0
  %1098 = vmatprep.subr.bf16.mxu0 0
  %1099 = vmatpush2.bf16.msra.mxu0 0
  %1100 = vmatprep.subr.bf16.mxu0 0
  %1101 = vmatpush2.bf16.msra.mxu0 0
  %1102 = vmatprep.subr.bf16.mxu0 0
  %1103 = vmatpush2.bf16.msra.mxu0 0
  %1104 = vmatprep.mubr.bf16.mxu0 0
  %1105 = vmatmul.mubr.bf16.gmra.mxu0 %v117
  %v1106 = vpop.f32.mrf.mxu0
  %v1107 = vadd.f32 0.0, %v1106
  %v1108 = vpop.f32.mrf.mxu0
  %v1109 = vpop.f32.mrf.mxu0
  %v1110 = vadd.f32 0.0, %v1109
  %v1111 = vpop.f32.mrf.mxu0
  %1112 = vmatprep.mubr.bf16.mxu0 0
  %1113 = vmatmul.mubr.bf16.gmra.mxu0 %v118
  %v1114 = vpop.f32.mrf.mxu0
  %v1115 = vadd.f32 0.0, %v1114
  %v1116 = vpop.f32.mrf.mxu0
  %v1117 = vpop.f32.mrf.mxu0
  %v1118 = vadd.f32 0.0, %v1117
  %v1119 = vpop.f32.mrf.mxu0
  %1120 = vmatprep.mubr.bf16.mxu0 0
  %1121 = vmatmul.mubr.bf16.gmra.mxu0 %v119
  %v1122 = vpop.f32.mrf.mxu0
  %v1123 = vadd.f32 0.0, %v1122
  %v1124 = vpop.f32.mrf.mxu0
  %v1125 = vpop.f32.mrf.mxu0
  %v1126 = vadd.f32 0.0, %v1125
  %v1127 = vpop.f32.mrf.mxu0
  %1128 = vmatprep.mubr.bf16.mxu0 0
  %1129 = vmatmul.mubr.bf16.gmra.mxu0 %v120
  %v1130 = vpop.f32.mrf.mxu0
  %v1131 = vadd.f32 0.0, %v1130
  %v1132 = vpop.f32.mrf.mxu0
  %v1133 = vpop.f32.mrf.mxu0
  %v1134 = vadd.f32 0.0, %v1133
  %v1135 = vpop.f32.mrf.mxu0
  %1136 = vmatprep.mubr.bf16.mxu0 0
  %1137 = vmatmul.mubr.bf16.gmra.mxu0 %v121
  %v1138 = vpop.f32.mrf.mxu0
  %v1139 = vadd.f32 0.0, %v1138
  %v1140 = vpop.f32.mrf.mxu0
  %v1141 = vpop.f32.mrf.mxu0
  %v1142 = vadd.f32 0.0, %v1141
  %v1143 = vpop.f32.mrf.mxu0
  %1144 = vmatprep.mubr.bf16.mxu0 0
  %1145 = vmatmul.mubr.bf16.gmra.mxu0 %v122
  %v1146 = vpop.f32.mrf.mxu0
  %v1147 = vadd.f32 0.0, %v1146
  %v1148 = vpop.f32.mrf.mxu0
  %v1149 = vpop.f32.mrf.mxu0
  %v1150 = vadd.f32 0.0, %v1149
  %v1151 = vpop.f32.mrf.mxu0
  %1152 = vmatprep.mubr.bf16.mxu0 0
  %1153 = vmatmul.mubr.bf16.gmra.mxu0 %v123
  %v1154 = vpop.f32.mrf.mxu0
  %v1155 = vadd.f32 0.0, %v1154
  %v1156 = vpop.f32.mrf.mxu0
  %v1157 = vpop.f32.mrf.mxu0
  %v1158 = vadd.f32 0.0, %v1157
  %v1159 = vpop.f32.mrf.mxu0
  %1160 = vmatprep.mubr.bf16.mxu0 0
  %1161 = vmatmul.mubr.bf16.gmra.mxu0 %v124
  %v1162 = vpop.f32.mrf.mxu0
  %v1163 = vadd.f32 0.0, %v1162
  %v1164 = vpop.f32.mrf.mxu0
  %v1165 = vpop.f32.mrf.mxu0
  %v1166 = vadd.f32 0.0, %v1165
  %v1167 = vpop.f32.mrf.mxu0
  %1168 = vdwg.mxu0
  %v1169 = vpack.c.bf16 %v1110, %v1107
  %v1170 = vpack.c.bf16 %v1118, %v1115
  %v1171 = vpack.c.bf16 %v1126, %v1123
  %v1172 = vpack.c.bf16 %v1134, %v1131
  %v1173 = vpack.c.bf16 %v1142, %v1139
  %v1174 = vpack.c.bf16 %v1150, %v1147
  %v1175 = vpack.c.bf16 %v1158, %v1155
  %v1176 = vpack.c.bf16 %v1166, %v1163
  %v1178 = vlaneseq
  %v1179 = vshrl.u32 %v1178, 7
  %v1180 = vsub.s32 0, %v1179
  %v1181 = vrot.slane %v1071, %v1180
  %v1199 = vunpack.c.l.b16 %v1055
  %v1200 = vunpack.c.l.b16 %v1056
  %v1201 = vunpack.c.l.b16 %v1057
  %v1202 = vunpack.c.l.b16 %v1058
  %v1203 = vunpack.c.l.b16 %v1059
  %v1204 = vunpack.c.l.b16 %v1060
  %v1205 = vunpack.c.l.b16 %v1061
  %v1206 = vunpack.c.l.b16 %v1062
  %v1207 = vunpack.c.l.b16 %v1063
  %v1208 = vunpack.c.l.b16 %v1064
  %v1209 = vunpack.c.l.b16 %v1065
  %v1210 = vunpack.c.l.b16 %v1066
  %v1211 = vunpack.c.l.b16 %v1067
  %v1212 = vunpack.c.l.b16 %v1068
  %v1213 = vunpack.c.l.b16 %v1069
  %v1214 = vunpack.c.l.b16 %v1070
  %v1215 = vpack.c.b16 %v1200, %v1199
  %v1216 = vpack.c.b16 %v1202, %v1201
  %v1217 = vpack.c.b16 %v1204, %v1203
  %v1218 = vpack.c.b16 %v1206, %v1205
  %v1219 = vpack.c.b16 %v1208, %v1207
  %v1220 = vpack.c.b16 %v1210, %v1209
  %v1221 = vpack.c.b16 %v1212, %v1211
  %v1222 = vpack.c.b16 %v1214, %v1213
  %1231 = vmatprep.subr.bf16.mxu0 0
  %1232 = vmatpush1.bf16.msra.mxu0 %v1222
  %1233 = vmatprep.subr.bf16.mxu0 0
  %1234 = vmatpush1.bf16.msra.mxu0 %v1221
  %1235 = vmatprep.subr.bf16.mxu0 0
  %1236 = vmatpush1.bf16.msra.mxu0 %v1220
  %1237 = vmatprep.subr.bf16.mxu0 0
  %1238 = vmatpush1.bf16.msra.mxu0 %v1219
  %1239 = vmatprep.subr.bf16.mxu0 0
  %1240 = vmatpush1.bf16.msra.mxu0 %v1218
  %1241 = vmatprep.subr.bf16.mxu0 0
  %1242 = vmatpush1.bf16.msra.mxu0 %v1217
  %1243 = vmatprep.subr.bf16.mxu0 0
  %1244 = vmatpush1.bf16.msra.mxu0 %v1216
  %1245 = vmatprep.subr.bf16.mxu0 0
  %1246 = vmatpush1.bf16.msra.mxu0 %v1215
  %1247 = vmatprep.subr.bf16.mxu0 0
  %1248 = vmatpush2.bf16.msra.mxu0 0
  %1249 = vmatprep.subr.bf16.mxu0 0
  %1250 = vmatpush2.bf16.msra.mxu0 0
  %1251 = vmatprep.subr.bf16.mxu0 0
  %1252 = vmatpush2.bf16.msra.mxu0 0
  %1253 = vmatprep.subr.bf16.mxu0 0
  %1254 = vmatpush2.bf16.msra.mxu0 0
  %1255 = vmatprep.subr.bf16.mxu0 0
  %1256 = vmatpush2.bf16.msra.mxu0 0
  %1257 = vmatprep.subr.bf16.mxu0 0
  %1258 = vmatpush2.bf16.msra.mxu0 0
  %1259 = vmatprep.subr.bf16.mxu0 0
  %1260 = vmatpush2.bf16.msra.mxu0 0
  %1261 = vmatprep.subr.bf16.mxu0 0
  %1262 = vmatpush2.bf16.msra.mxu0 0
  %1263 = vmatprep.mubr.bf16.mxu0 0
  %1264 = vmatmul.mubr.bf16.gmra.mxu0 %v1169
  %v1265 = vpop.f32.mrf.mxu0
  %v1266 = vadd.f32 %v1181, %v1265
  %v1267 = vpop.f32.mrf.mxu0
  %v1268 = vpop.f32.mrf.mxu0
  %v1269 = vadd.f32 %v1181, %v1268
  %v1270 = vpop.f32.mrf.mxu0
  %1271 = vmatprep.mubr.bf16.mxu0 0
  %1272 = vmatmul.mubr.bf16.gmra.mxu0 %v1170
  %v1273 = vpop.f32.mrf.mxu0
  %v1274 = vadd.f32 %v1181, %v1273
  %v1275 = vpop.f32.mrf.mxu0
  %v1276 = vpop.f32.mrf.mxu0
  %v1277 = vadd.f32 %v1181, %v1276
  %v1278 = vpop.f32.mrf.mxu0
  %1279 = vmatprep.mubr.bf16.mxu0 0
  %1280 = vmatmul.mubr.bf16.gmra.mxu0 %v1171
  %v1281 = vpop.f32.mrf.mxu0
  %v1282 = vadd.f32 %v1181, %v1281
  %v1283 = vpop.f32.mrf.mxu0
  %v1284 = vpop.f32.mrf.mxu0
  %v1285 = vadd.f32 %v1181, %v1284
  %v1286 = vpop.f32.mrf.mxu0
  %1287 = vmatprep.mubr.bf16.mxu0 0
  %1288 = vmatmul.mubr.bf16.gmra.mxu0 %v1172
  %v1289 = vpop.f32.mrf.mxu0
  %v1290 = vadd.f32 %v1181, %v1289
  %v1291 = vpop.f32.mrf.mxu0
  %v1292 = vpop.f32.mrf.mxu0
  %v1293 = vadd.f32 %v1181, %v1292
  %v1294 = vpop.f32.mrf.mxu0
  %1295 = vmatprep.mubr.bf16.mxu0 0
  %1296 = vmatmul.mubr.bf16.gmra.mxu0 %v1173
  %v1297 = vpop.f32.mrf.mxu0
  %v1298 = vadd.f32 %v1181, %v1297
  %v1299 = vpop.f32.mrf.mxu0
  %v1300 = vpop.f32.mrf.mxu0
  %v1301 = vadd.f32 %v1181, %v1300
  %v1302 = vpop.f32.mrf.mxu0
  %1303 = vmatprep.mubr.bf16.mxu0 0
  %1304 = vmatmul.mubr.bf16.gmra.mxu0 %v1174
  %v1305 = vpop.f32.mrf.mxu0
  %v1306 = vadd.f32 %v1181, %v1305
  %v1307 = vpop.f32.mrf.mxu0
  %v1308 = vpop.f32.mrf.mxu0
  %v1309 = vadd.f32 %v1181, %v1308
  %v1310 = vpop.f32.mrf.mxu0
  %1311 = vmatprep.mubr.bf16.mxu0 0
  %1312 = vmatmul.mubr.bf16.gmra.mxu0 %v1175
  %v1313 = vpop.f32.mrf.mxu0
  %v1314 = vadd.f32 %v1181, %v1313
  %v1315 = vpop.f32.mrf.mxu0
  %v1316 = vpop.f32.mrf.mxu0
  %v1317 = vadd.f32 %v1181, %v1316
  %v1318 = vpop.f32.mrf.mxu0
  %1319 = vmatprep.mubr.bf16.mxu0 0
  %1320 = vmatmul.mubr.bf16.gmra.mxu0 %v1176
  %v1321 = vpop.f32.mrf.mxu0
  %v1322 = vadd.f32 %v1181, %v1321
  %v1323 = vpop.f32.mrf.mxu0
  %v1324 = vpop.f32.mrf.mxu0
  %v1325 = vadd.f32 %v1181, %v1324
  %v1326 = vpop.f32.mrf.mxu0
  %1327 = vdwg.mxu0
  %v1328 = vmax.f32 %v1266, 0.0
  %v1329 = vmax.f32 %v1269, 0.0
  %v1330 = vmax.f32 %v1274, 0.0
  %v1331 = vmax.f32 %v1277, 0.0
  %v1332 = vmax.f32 %v1282, 0.0
  %v1333 = vmax.f32 %v1285, 0.0
  %v1334 = vmax.f32 %v1290, 0.0
  %v1335 = vmax.f32 %v1293, 0.0
  %v1336 = vmax.f32 %v1298, 0.0
  %v1337 = vmax.f32 %v1301, 0.0
  %v1338 = vmax.f32 %v1306, 0.0
  %v1339 = vmax.f32 %v1309, 0.0
  %v1340 = vmax.f32 %v1314, 0.0
  %v1341 = vmax.f32 %v1317, 0.0
  %v1342 = vmax.f32 %v1322, 0.0
  %v1343 = vmax.f32 %v1325, 0.0
  %1344 = vst [vmem:[%s10] sm:$0xff] %v1328
  %1345 = vst [vmem:[%s10 + $0x8] sm:$0xff] %v1329
  %1346 = vst [vmem:[%s10 + $0x10] sm:$0xff] %v1330
  %1347 = vst [vmem:[%s10 + $0x18] sm:$0xff] %v1331
  %1348 = vst [vmem:[%s10 + $0x20] sm:$0xff] %v1332
  %1349 = vst [vmem:[%s10 + $0x28] sm:$0xff] %v1333
  %1350 = vst [vmem:[%s10 + $0x30] sm:$0xff] %v1334
  %1351 = vst [vmem:[%s10 + $0x38] sm:$0xff] %v1335
  %1352 = vst [vmem:[%s10 + $0x40] sm:$0xff] %v1336
  %1353 = vst [vmem:[%s10 + $0x48] sm:$0xff] %v1337
  %1354 = vst [vmem:[%s10 + $0x50] sm:$0xff] %v1338
  %1355 = vst [vmem:[%s10 + $0x58] sm:$0xff] %v1339
  %1356 = vst [vmem:[%s10 + $0x60] sm:$0xff] %v1340
  %1357 = vst [vmem:[%s10 + $0x68] sm:$0xff] %v1341
  %1358 = vst [vmem:[%s10 + $0x70] sm:$0xff] %v1342
  %1359 = vst [vmem:[%s10 + $0x78] sm:$0xff] %v1343
  // Predicated region
  $region42: #{net_forward.1} parent=0 // pred_check
    _
  $region43: #{net_forward.1} parent=0 // pred_check_branch
    %1361 = sbr.rel (0) target = $region45
  $region44: #{net_forward.1} parent=0 // pred_region
    _
  $region45: #{net_forward.1} parent=0 // pred_fallthru
    _
  // Predicated region
  $region46: #{net_forward.1} parent=0 // pred_check
    _
  $region47: #{net_forward.1} parent=0 // pred_check_branch
    %1363 = sbr.rel (0) target = $region49
  $region48: #{net_forward.1} parent=0 // pred_region
    _
  $region49: #{net_forward.1} parent=0 // pred_fallthru
    _

</llo_original>
